<compile_context>
chip_gen: v7x
topology: tpu7x:2x2x1
jax: 0.10.0
libtpu: 0.0.40
codegen_flags: <defaults>
</compile_context>

<pallas_src>
import functools

import jax
import jax.numpy as jnp
from jax.experimental import pallas as pl
from jax.experimental.pallas import tpu as pltpu


_LANE = 128
_BN_EPS = 1e-5


def _round_up(n, m):
    return ((n + m - 1) // m) * m


# ---------------------------------------------------------------------------
# Fused kernel (generated per network depth)
# ---------------------------------------------------------------------------
def _make_fused_kernel(n_hidden):
    """Operand order: x, (W_i, gamma_beta_i) * n_hidden, W_final, b_final, out."""

    def kernel(*refs):
        x_ref = refs[0]
        wf_ref = refs[-3]
        bf_ref = refs[-2]
        out_ref = refs[-1]

        h = x_ref[...].astype(jnp.float32)                    # (B, Cin)
        inv_b = 1.0 / x_ref.shape[0]                          # static
        for i in range(n_hidden):
            w_ref = refs[1 + 2 * i]                           # (Cin_packed, Cout_packed)
            gb_ref = refs[2 + 2 * i]                          # (2, Cout_packed) f32
            w = w_ref[...]
            # Matmul operands may be bf16 (MXU-native); accumulate in f32.
            h = jnp.dot(h.astype(w.dtype), w,
                        preferred_element_type=jnp.float32)
            # BatchNorm1d forward, training mode (biased batch statistics).
            # Two independent reductions, then a single fused affine + ReLU:
            #   scale = gamma * rsqrt(var + eps); shift = beta - mean * scale.
            # (Linear bias omitted -- cancelled exactly by mean subtraction.)
            s1 = jnp.sum(h, axis=0, keepdims=True)
            s2 = jnp.sum(h * h, axis=0, keepdims=True)
            mean = s1 * inv_b
            var = jnp.maximum(s2 * inv_b - mean * mean, 0.0)
            inv = jax.lax.rsqrt(var + _BN_EPS)
            scale = gb_ref[0:1, :] * inv                      # gamma folded in
            shift = gb_ref[1:2, :] - mean * scale             # beta folded in
            h = jnp.maximum(h * scale + shift, 0.0)           # BN affine + ReLU

        wf = wf_ref[...]
        out = jnp.dot(h.astype(wf.dtype), wf,
                      preferred_element_type=jnp.float32)
        out_ref[...] = (out + bf_ref[...]).astype(out_ref.dtype)

    return kernel


# ---------------------------------------------------------------------------
# Parameter construction (PyTorch-default-style init, then head packing)
# ---------------------------------------------------------------------------
def _torch_linear_init(key, in_dim, out_dim):
    """nn.Linear default init U(-1/sqrt(in), 1/sqrt(in)); weight transposed (in, out)."""
    kw, kb = jax.random.split(key)
    bound = 1.0 / (in_dim ** 0.5)
    w = jax.random.uniform(kw, (in_dim, out_dim), jnp.float32, -bound, bound)
    b = jax.random.uniform(kb, (out_dim,), jnp.float32, -bound, bound)
    return w, b


class PredictionNetworkPallas:
    def __init__(self, action_space_size, num_channels, fc_value_layers,
                 fc_policy_layers, full_support_size, momentum=0.1,
                 init_zero=False, key=None, matmul_dtype=jnp.float32,
                 bn_params=None):
        # momentum only affects running-stat updates, not this forward.
        del momentum
        assert len(fc_value_layers) == len(fc_policy_layers), (
            "fused kernel assumes both heads have the same depth")
        if key is None:
            key = jax.random.PRNGKey(0)

        n_hidden = len(fc_value_layers)
        v_sizes = [num_channels] + list(fc_value_layers)
        p_sizes = [num_channels] + list(fc_policy_layers)

        keys = jax.random.split(key, 2 * (n_hidden + 1))
        v_keys, p_keys = keys[: n_hidden + 1], keys[n_hidden + 1:]

        # ---- raw per-head weights ----
        v_hidden = [_torch_linear_init(v_keys[i], v_sizes[i], v_sizes[i + 1])[0]
                    for i in range(n_hidden)]
        p_hidden = [_torch_linear_init(p_keys[i], p_sizes[i], p_sizes[i + 1])[0]
                    for i in range(n_hidden)]
        if init_zero:
            wv_f = jnp.zeros((v_sizes[-1], full_support_size), jnp.float32)
            bv_f = jnp.zeros((full_support_size,), jnp.float32)
            wp_f = jnp.zeros((p_sizes[-1], action_space_size), jnp.float32)
            bp_f = jnp.zeros((action_space_size,), jnp.float32)
        else:
            wv_f, bv_f = _torch_linear_init(v_keys[-1], v_sizes[-1], full_support_size)
            wp_f, bp_f = _torch_linear_init(p_keys[-1], p_sizes[-1], action_space_size)

        # ---- BN affine params (PyTorch init: gamma=1, beta=0, unless given) ----
        if bn_params is None:
            v_gammas = [jnp.ones((v_sizes[i + 1],), jnp.float32) for i in range(n_hidden)]
            v_betas = [jnp.zeros((v_sizes[i + 1],), jnp.float32) for i in range(n_hidden)]
            p_gammas = [jnp.ones((p_sizes[i + 1],), jnp.float32) for i in range(n_hidden)]
            p_betas = [jnp.zeros((p_sizes[i + 1],), jnp.float32) for i in range(n_hidden)]
        else:
            v_gammas, v_betas, p_gammas, p_betas = bn_params

        self._raw = (v_hidden, v_gammas, v_betas, wv_f, bv_f,
                     p_hidden, p_gammas, p_betas, wp_f, bp_f)

        # ---- pack both heads into fused, lane-dense (128-padded) operands ----
        # TODO(synk): at Atari widths (512+512) the block-diagonal packing does
        # 2x the needed MXU work / weight bytes; restructure there.
        hidden_ops = []
        v_off, p_off = 0, 0          # both heads read raw x for layer 0
        in_packed = num_channels
        for i in range(n_hidden):
            v_in, v_out = v_sizes[i], v_sizes[i + 1]
            p_in, p_out = p_sizes[i], p_sizes[i + 1]
            out_packed = _round_up(v_out + p_out, _LANE)
            w = jnp.zeros((in_packed, out_packed), jnp.float32)
            w = w.at[v_off:v_off + v_in, 0:v_out].set(v_hidden[i])
            w = w.at[p_off:p_off + p_in, v_out:v_out + p_out].set(p_hidden[i])
            gamma = jnp.zeros((out_packed,), jnp.float32)
            gamma = gamma.at[0:v_out].set(v_gammas[i])
            gamma = gamma.at[v_out:v_out + p_out].set(p_gammas[i])
            beta = jnp.zeros((out_packed,), jnp.float32)
            beta = beta.at[0:v_out].set(v_betas[i])
            beta = beta.at[v_out:v_out + p_out].set(p_betas[i])
            hidden_ops.append((w.astype(matmul_dtype),
                               jnp.stack([gamma, beta], axis=0)))
            v_off, p_off = 0, v_out
            in_packed = out_packed

        fs, asz = full_support_size, action_space_size
        out_packed = _round_up(fs + asz, _LANE)
        wf = jnp.zeros((in_packed, out_packed), jnp.float32)
        wf = wf.at[v_off:v_off + v_sizes[-1], 0:fs].set(wv_f)
        wf = wf.at[p_off:p_off + p_sizes[-1], fs:fs + asz].set(wp_f)
        bf = jnp.zeros((1, out_packed), jnp.float32)
        bf = bf.at[0, 0:fs].set(bv_f)
        bf = bf.at[0, fs:fs + asz].set(bp_f)

        self.hidden_ops = hidden_ops
        self.final_w = wf.astype(matmul_dtype)
        self.final_b = bf
        self.n_hidden = n_hidden
        self._in_channels = num_channels
        self._out_packed = out_packed
        self.full_support_size = fs
        self.action_space_size = asz

    # -- advisory cost / memory estimates (computed at trace time) ----------
    def _cost_estimate(self, B):
        flops = 0
        transcendentals = 0
        bytes_accessed = B * self._in_channels * 4 + B * self._out_packed * 4
        for (w, gb) in self.hidden_ops:
            cin, cout = w.shape
            flops += 2 * B * cin * cout + 8 * B * cout      # matmul + BN/ReLU
            transcendentals += cout                          # rsqrt per lane
            bytes_accessed += w.size * w.dtype.itemsize + gb.size * 4
        cinf, coutf = self.final_w.shape
        flops += 2 * B * cinf * coutf + B * coutf
        bytes_accessed += (self.final_w.size * self.final_w.dtype.itemsize
                           + self.final_b.size * 4)
        return pl.CostEstimate(flops=int(flops),
                               transcendentals=int(transcendentals),
                               bytes_accessed=int(bytes_accessed))

    def _vmem_estimate(self, B):
        total = B * self._in_channels * 4 + B * self._out_packed * 4
        for (w, gb) in self.hidden_ops:
            total += w.size * w.dtype.itemsize + gb.size * 4
            total += B * w.shape[1] * 4                      # live intermediate
        total += (self.final_w.size * self.final_w.dtype.itemsize
                  + self.final_b.size * 4)
        return total

    @functools.partial(jax.jit, static_argnums=0)
    def __call__(self, x):
        # Equivalent to x.squeeze() for (B, C, 1, 1) / (B, C) inputs, but keeps
        # the batch dimension even when B == 1.  Callers should batch many
        # MCTS leaf evaluations per call (B >= ~128) to amortize launch/DMA.
        x = x.reshape(x.shape[0], -1)
        B = x.shape[0]

        args = [x]
        for (w, gb) in self.hidden_ops:
            args += [w, gb]
        args += [self.final_w, self.final_b]

        # Whole-array VMEM blocks (no grid): BN needs full-batch statistics,
        # so the batch must stay within one block.
        compiler_params = None
        vmem_bytes = self._vmem_estimate(B)
        if vmem_bytes > (8 << 20):
            compiler_params = pltpu.CompilerParams(
                vmem_limit_bytes=min(int(vmem_bytes * 2) + (4 << 20), 100 << 20))

        out = pl.pallas_call(
            _make_fused_kernel(self.n_hidden),
            out_shape=jax.ShapeDtypeStruct((B, self._out_packed), jnp.float32),
            cost_estimate=self._cost_estimate(B),
            compiler_params=compiler_params,
        )(*args)

        fs, asz = self.full_support_size, self.action_space_size
        value = out[:, :fs]
        policy = out[:, fs:fs + asz]
        return policy, value


# ---------------------------------------------------------------------------
# Pure-JAX reference (train-mode BN; hidden Linear bias dropped -- exactly
# cancelled by the batch-mean subtraction, so this matches PyTorch).
# ---------------------------------------------------------------------------
def _reference_forward(raw, x):
    (v_hidden, v_g, v_b, wv_f, bv_f,
     p_hidden, p_g, p_b, wp_f, bp_f) = raw
    x = x.reshape(x.shape[0], -1)

    def head(hidden_ws, gammas, betas, wf, bf, h):
        for w, g, b in zip(hidden_ws, gammas, betas):
            h = h @ w
            mean = h.mean(axis=0, keepdims=True)
            var = ((h - mean) ** 2).mean(axis=0, keepdims=True)
            h = (h - mean) / jnp.sqrt(var + _BN_EPS)
            h = h * g + b
            h = jnp.maximum(h, 0.0)
        return h @ wf + bf

    value = head(v_hidden, v_g, v_b, wv_f, bv_f, x)
    policy = head(p_hidden, p_g, p_b, wp_f, bp_f, x)
    return policy, value


# ---------------------------------------------------------------------------
if __name__ == "__main__":
    # Small shapes consistent with the cartpole config.  B=32 (not 8) so the
    # per-call fixed cost is better amortized; BN statistics are per-batch.
    batch = 32
    num_channels = 32
    action_space_size = 2
    full_support_size = 21
    fc_value_layers = [32]
    fc_policy_layers = [32]
    n_hidden = len(fc_value_layers)

    key = jax.random.PRNGKey(0)
    k_x, k_net, k_bn = jax.random.split(key, 3)

    # Hidden state as produced upstream: (B, C, 1, 1), squeezed in forward().
    x = jax.random.normal(k_x, (batch, num_channels, 1, 1), jnp.float32)

    # ---- f32 matmuls, PyTorch-init BN (gamma=1, beta=0): exact check ----
    net = PredictionNetworkPallas(
        action_space_size=action_space_size,
        num_channels=num_channels,
        fc_value_layers=fc_value_layers,
        fc_policy_layers=fc_policy_layers,
        full_support_size=full_support_size,
        init_zero=False,
        key=k_net,
    )
    policy, value = net(x)
    jax.block_until_ready((policy, value))
    assert policy.shape == (batch, action_space_size), policy.shape
    assert value.shape == (batch, full_support_size), value.shape

    ref_policy, ref_value = _reference_forward(net._raw, x)
    assert jnp.allclose(policy, ref_policy, atol=1e-3, rtol=1e-3)
    assert jnp.allclose(value, ref_value, atol=1e-3, rtol=1e-3)

    # ---- bf16 matmuls + non-trivial gamma/beta: exercises the packed BN
    #      affine path and the MXU-native dtype path (loose tolerance) ----
    bn_keys = jax.random.split(k_bn, 4 * n_hidden)
    v_g = [jax.random.uniform(bn_keys[i], (fc_value_layers[i],), jnp.float32, 0.5, 1.5)
           for i in range(n_hidden)]
    v_b = [jax.random.uniform(bn_keys[n_hidden + i], (fc_value_layers[i],), jnp.float32, -0.5, 0.5)
           for i in range(n_hidden)]
    p_g = [jax.random.uniform(bn_keys[2 * n_hidden + i], (fc_policy_layers[i],), jnp.float32, 0.5, 1.5)
           for i in range(n_hidden)]
    p_b = [jax.random.uniform(bn_keys[3 * n_hidden + i], (fc_policy_layers[i],), jnp.float32, -0.5, 0.5)
           for i in range(n_hidden)]

    net_bf16 = PredictionNetworkPallas(
        action_space_size=action_space_size,
        num_channels=num_channels,
        fc_value_layers=fc_value_layers,
        fc_policy_layers=fc_policy_layers,
        full_support_size=full_support_size,
        init_zero=False,
        key=k_net,
        matmul_dtype=jnp.bfloat16,
        bn_params=(v_g, v_b, p_g, p_b),
    )
    policy2, value2 = net_bf16(x)
    jax.block_until_ready((policy2, value2))
    assert policy2.shape == (batch, action_space_size), policy2.shape
    assert value2.shape == (batch, full_support_size), value2.shape
    assert bool(jnp.all(jnp.isfinite(policy2))) and bool(jnp.all(jnp.isfinite(value2)))

    ref_policy2, ref_value2 = _reference_forward(net_bf16._raw, x)
    assert jnp.allclose(policy2, ref_policy2, atol=1e-1, rtol=1e-1)
    assert jnp.allclose(value2, ref_value2, atol=1e-1, rtol=1e-1)

    print("KERNEL_OK")
</pallas_src>

<mosaic_0001>
module attributes {stable_mosaic.version = 11 : i64} {
  func.func @kernel(%arg0: memref<32x32xf32, #tpu.memory_space<vmem>>, %arg1: memref<32x128xf32, #tpu.memory_space<vmem>>, %arg2: memref<2x128xf32, #tpu.memory_space<vmem>>, %arg3: memref<128x128xf32, #tpu.memory_space<vmem>>, %arg4: memref<1x128xf32, #tpu.memory_space<vmem>>, %arg5: memref<32x128xf32, #tpu.memory_space<vmem>>) attributes {dimension_semantics = [], scalar_prefetch = 0 : i64, scratch_operands = 0 : i64, tpu.core_type = #tpu.core_type<tc>} {
    %c0 = arith.constant 0 : index
    %c0_0 = arith.constant 0 : index
    %0 = vector.load %arg0[%c0, %c0_0] : memref<32x32xf32, #tpu.memory_space<vmem>>, vector<32x32xf32>
    %c0_1 = arith.constant 0 : index
    %c0_2 = arith.constant 0 : index
    %1 = vector.load %arg1[%c0_1, %c0_2] : memref<32x128xf32, #tpu.memory_space<vmem>>, vector<32x128xf32>
    %cst = arith.constant dense<0.000000e+00> : vector<32x128xf32>
    %2 = tpu.matmul %0, %1, %cst {dimension_numbers = #tpu.dot_dimension_numbers<[1], [0], [0], [1], [0, 0, 1, 1], [], []>} : vector<32x32xf32>, vector<32x128xf32>, vector<32x128xf32> -> vector<32x128xf32>
    %cst_3 = arith.constant dense<0.000000e+00> : vector<128xf32>
    %3 = vector.multi_reduction <add>, %2, %cst_3 [0] : vector<32x128xf32> to vector<128xf32>
    %4 = vector.shape_cast %3 : vector<128xf32> to vector<1x128xf32>
    %5 = arith.mulf %2, %2 : vector<32x128xf32>
    %cst_4 = arith.constant dense<0.000000e+00> : vector<128xf32>
    %6 = vector.multi_reduction <add>, %5, %cst_4 [0] : vector<32x128xf32> to vector<128xf32>
    %7 = vector.shape_cast %6 : vector<128xf32> to vector<1x128xf32>
    %cst_5 = arith.constant 3.125000e-02 : f32
    %8 = vector.broadcast %cst_5 : f32 to vector<1x128xf32>
    %9 = arith.mulf %4, %8 : vector<1x128xf32>
    %cst_6 = arith.constant 3.125000e-02 : f32
    %10 = vector.broadcast %cst_6 : f32 to vector<1x128xf32>
    %11 = arith.mulf %7, %10 : vector<1x128xf32>
    %12 = arith.mulf %9, %9 : vector<1x128xf32>
    %13 = arith.subf %11, %12 : vector<1x128xf32>
    %cst_7 = arith.constant 0.000000e+00 : f32
    %14 = vector.broadcast %cst_7 : f32 to vector<1x128xf32>
    %15 = arith.maximumf %13, %14 : vector<1x128xf32>
    %cst_8 = arith.constant 9.99999974E-6 : f32
    %16 = vector.broadcast %cst_8 : f32 to vector<1x128xf32>
    %17 = arith.addf %15, %16 : vector<1x128xf32>
    %18 = math.rsqrt %17 : vector<1x128xf32>
    %c0_9 = arith.constant 0 : index
    %c0_10 = arith.constant 0 : index
    %19 = vector.load %arg2[%c0_9, %c0_10] : memref<2x128xf32, #tpu.memory_space<vmem>>, vector<1x128xf32>
    %20 = arith.mulf %19, %18 : vector<1x128xf32>
    %c1 = arith.constant 1 : index
    %c0_11 = arith.constant 0 : index
    %21 = vector.load %arg2[%c1, %c0_11] : memref<2x128xf32, #tpu.memory_space<vmem>>, vector<1x128xf32>
    %22 = arith.mulf %9, %20 : vector<1x128xf32>
    %23 = arith.subf %21, %22 : vector<1x128xf32>
    %24 = vector.broadcast %20 : vector<1x128xf32> to vector<32x128xf32>
    %25 = arith.mulf %2, %24 : vector<32x128xf32>
    %26 = vector.broadcast %23 : vector<1x128xf32> to vector<32x128xf32>
    %27 = arith.addf %25, %26 : vector<32x128xf32>
    %cst_12 = arith.constant 0.000000e+00 : f32
    %28 = vector.broadcast %cst_12 : f32 to vector<32x128xf32>
    %29 = arith.maximumf %27, %28 : vector<32x128xf32>
    %c0_13 = arith.constant 0 : index
    %c0_14 = arith.constant 0 : index
    %30 = vector.load %arg3[%c0_13, %c0_14] : memref<128x128xf32, #tpu.memory_space<vmem>>, vector<128x128xf32>
    %cst_15 = arith.constant dense<0.000000e+00> : vector<32x128xf32>
    %31 = tpu.matmul %29, %30, %cst_15 {dimension_numbers = #tpu.dot_dimension_numbers<[1], [0], [0], [1], [0, 0, 1, 1], [], []>} : vector<32x128xf32>, vector<128x128xf32>, vector<32x128xf32> -> vector<32x128xf32>
    %c0_16 = arith.constant 0 : index
    %c0_17 = arith.constant 0 : index
    %32 = vector.load %arg4[%c0_16, %c0_17] : memref<1x128xf32, #tpu.memory_space<vmem>>, vector<1x128xf32>
    %33 = vector.broadcast %32 : vector<1x128xf32> to vector<32x128xf32>
    %34 = arith.addf %31, %33 : vector<32x128xf32>
    %c0_18 = arith.constant 0 : index
    %c0_19 = arith.constant 0 : index
    %35 = vector.load %arg5[%c0_18, %c0_19] : memref<32x128xf32, #tpu.memory_space<vmem>>, vector<32x128xf32>
    tpu.vector_store %arg5[%c0_18, %c0_19], %34 {strides = array<i32>} : memref<32x128xf32, #tpu.memory_space<vmem>>, vector<32x128xf32>,
    return
  }
}

</mosaic_0001>

<llo_original>
// kernel: a_call__.1
$region0: #{a_call__.1}
  #allocation0 [shape = 'u32[]', space=smem, size = 0x4, offset = 0x4, fixed_abs, tag = 'smem constant byte address 0x4 - core index']
  #allocation1 [shape = 'u32[144,128]{1,0:T(1,128)}', space=vmem, size = 0x12000, scoped, tag = 'internal scratch']
  %s0 = inlined_call_operand.hbm [shape: f32[32,32], index: 0, kind: input, shape index: {}]
  %s1 = inlined_call_operand.hbm [shape: f32[32,128], index: 1, kind: input, shape index: {}]
  %s2 = inlined_call_operand.vmem [shape: f32[2,128], index: 2, kind: input, shape index: {}]
  %s3 = inlined_call_operand.hbm [shape: f32[128,128], index: 3, kind: input, shape index: {}]
  %s4 = inlined_call_operand.vmem [shape: f32[1,128], index: 4, kind: input, shape index: {}]
  %s5 = inlined_call_operand.vmem [shape: f32[32,128], index: 5, kind: output, shape index: {}]
  %s6 = sld [smem:[#allocation0]]
  $region42: #{a_call__.1} parent=0
    _
  %s8 = ssub.s32 1, %s6
  %s9 = scalar_select 0, %s8, %s6
  $region1: #{a_call__.1} parent=0
    #allocation2 [shape = 'u8[16384]{0}', space=vmem, size = 0x4000, scoped, tag = 'input window, operand 0, single buffered']
    #allocation3 [shape = 's32[1]{0}', space=sflag, size = 0x4, scoped, tag = 'scoped memory for a_call__.1']
    #allocation4 [shape = 'u8[16384]{0}', space=vmem, size = 0x4000, scoped, tag = 'input window, operand 1, single buffered']
    #allocation5 [shape = 's32[1]{0}', space=sflag, size = 0x4, scoped, tag = 'scoped memory for a_call__.1']
    #allocation6 [shape = 'u8[65536]{0}', space=vmem, size = 0x10000, scoped, tag = 'input window, operand 3, single buffered']
    %10 = vsyncpa [#allocation3], 0
    %11 = vsyncpa [#allocation5], 0
    // Predicated region
    $region2: #{a_call__.1} parent=1 // pred_check
      _
    $region3: #{a_call__.1} parent=1 // pred_check_branch
      %13 = sbr.rel (0) target = $region5
    $region4: #{a_call__.1} parent=1 // pred_region
      %s15 = ssub.s32 512, 512
      %16 = vsyncadd [#allocation3], %s15
      %s17 = sshll.u32 [#allocation2], 4
      %s18 = int_to_ptr.vmem [resolvable:$true] %s17
      %23 = dma.hbm_to_vmem [thread:$0]  %s0, 512, %s18, [#allocation3], 128, 128, 8
    $region5: #{a_call__.1} parent=1 // pred_fallthru
      _
    // Predicated region
    $region6: #{a_call__.1} parent=1 // pred_check
      _
    $region7: #{a_call__.1} parent=1 // pred_check_branch
      %25 = sbr.rel (0) target = $region9
    $region8: #{a_call__.1} parent=1 // pred_region
      %s27 = ssub.s32 512, 512
      %28 = vsyncadd [#allocation5], %s27
      %s29 = sshll.u32 [#allocation4], 4
      %s30 = int_to_ptr.vmem [resolvable:$true] %s29
      %35 = dma.hbm_to_vmem [thread:$0]  %s1, 512, %s30, [#allocation5], 128, 128, 8
    $region9: #{a_call__.1} parent=1 // pred_fallthru
      _
    // Predicated region
    $region10: #{a_call__.1} parent=1 // pred_check
      _
    $region11: #{a_call__.1} parent=1 // pred_check_branch
      %37 = sbr.rel (0) target = $region13
    $region12: #{a_call__.1} parent=1 // pred_region
      _
    $region13: #{a_call__.1} parent=1 // pred_fallthru
      _
    // Predicated region
    $region14: #{a_call__.1} parent=1 // pred_check
      _
    $region15: #{a_call__.1} parent=1 // pred_check_branch
      %39 = sbr.rel (0) target = $region17
    $region16: #{a_call__.1} parent=1 // pred_region
      %s41 = ssub.s32 2048, 2048
      %42 = vsyncadd [#allocation5], %s41
      %s43 = sshll.u32 [#allocation6], 4
      %s44 = int_to_ptr.vmem [resolvable:$true] %s43
      %49 = dma.hbm_to_vmem [thread:$0]  %s3, 2048, %s44, [#allocation5], 128, 128, 8
    $region17: #{a_call__.1} parent=1 // pred_fallthru
      _
    // Predicated region
    $region18: #{a_call__.1} parent=1 // pred_check
      _
    $region19: #{a_call__.1} parent=1 // pred_check_branch
      %51 = sbr.rel (0) target = $region21
    $region20: #{a_call__.1} parent=1 // pred_region
      _
    $region21: #{a_call__.1} parent=1 // pred_fallthru
      _
    // Predicated region
    $region22: #{a_call__.1} parent=1 // pred_check
      _
    $region23: #{a_call__.1} parent=1 // pred_check_branch
      %53 = sbr.rel (0) target = $region25
    $region24: #{a_call__.1} parent=1 // pred_region
      %54 = dma.done [#allocation3], 512
    $region25: #{a_call__.1} parent=1 // pred_fallthru
      _
    // Predicated region
    $region26: #{a_call__.1} parent=1 // pred_check
      _
    $region27: #{a_call__.1} parent=1 // pred_check_branch
      %56 = sbr.rel (0) target = $region29
    $region28: #{a_call__.1} parent=1 // pred_region
      %57 = dma.done [#allocation5], 512
    $region29: #{a_call__.1} parent=1 // pred_fallthru
      _
    // Predicated region
    $region30: #{a_call__.1} parent=1 // pred_check
      _
    $region31: #{a_call__.1} parent=1 // pred_check_branch
      %59 = sbr.rel (0) target = $region33
    $region32: #{a_call__.1} parent=1 // pred_region
      %60 = dma.done [#allocation5], 2048
    $region33: #{a_call__.1} parent=1 // pred_fallthru
      _
    %v61 = vld [vmem:[#allocation2] sm:$0xff]
    %v62 = vld [vmem:[#allocation2 + $0x8] sm:$0xff]
    %v63 = vld [vmem:[#allocation2 + $0x10] sm:$0xff]
    %v64 = vld [vmem:[#allocation2 + $0x18] sm:$0xff]
    %v65 = vld [vmem:[#allocation4] sm:$0xff]
    %v66 = vld [vmem:[#allocation4 + $0x8] sm:$0xff]
    %v67 = vld [vmem:[#allocation4 + $0x10] sm:$0xff]
    %v68 = vld [vmem:[#allocation4 + $0x18] sm:$0xff]
    %vm69 = vcmask 261120
    %v71 = vsel %vm69, %v61, 0
    %v74 = vsel %vm69, %v62, 0
    %v77 = vsel %vm69, %v63, 0
    %v80 = vsel %vm69, %v64, 0
    %82 = vmatprep.subr.mxu0 0.0
    %83 = vmatpush1.msra.mxu0 %v65
    %84 = vmatprep.subr.mxu0 0.0
    %85 = vmatpush1.msra.mxu0 %v66
    %86 = vmatprep.subr.mxu0 0.0
    %87 = vmatpush1.msra.mxu0 %v67
    %88 = vmatprep.subr.mxu0 0.0
    %89 = vmatpush1.msra.mxu0 %v68
    %90 = vmatprep.subr.mxu0 0.0
    %91 = vmatpush1.msra.mxu0 0.0
    %92 = vmatprep.subr.mxu0 0.0
    %93 = vmatpush1.msra.mxu0 0.0
    %94 = vmatprep.subr.mxu0 0.0
    %95 = vmatpush1.msra.mxu0 0.0
    %96 = vmatprep.subr.mxu0 0.0
    %97 = vmatpush1.msra.mxu0 0.0
    %98 = vmatprep.subr.mxu0 0.0
    %99 = vmatpush1.msra.mxu0 0.0
    %100 = vmatprep.subr.mxu0 0.0
    %101 = vmatpush1.msra.mxu0 0.0
    %102 = vmatprep.subr.mxu0 0.0
    %103 = vmatpush1.msra.mxu0 0.0
    %104 = vmatprep.subr.mxu0 0.0
    %105 = vmatpush1.msra.mxu0 0.0
    %106 = vmatprep.subr.mxu0 0.0
    %107 = vmatpush1.msra.mxu0 0.0
    %108 = vmatprep.subr.mxu0 0.0
    %109 = vmatpush1.msra.mxu0 0.0
    %110 = vmatprep.subr.mxu0 0.0
    %111 = vmatpush1.msra.mxu0 0.0
    %112 = vmatprep.subr.mxu0 0.0
    %113 = vmatpush1.msra.mxu0 0.0
    %114 = vmatprep.subr.mxu0 0.0
    %115 = vmatpush1.msra.mxu0 0.0
    %116 = vmatprep.subr.mxu0 0.0
    %117 = vmatpush1.msra.mxu0 0.0
    %118 = vmatprep.subr.mxu0 0.0
    %119 = vmatpush1.msra.mxu0 0.0
    %120 = vmatprep.subr.mxu0 0.0
    %121 = vmatpush1.msra.mxu0 0.0
    %122 = vmatprep.subr.mxu0 0.0
    %123 = vmatpush1.msra.mxu0 0.0
    %124 = vmatprep.subr.mxu0 0.0
    %125 = vmatpush1.msra.mxu0 0.0
    %126 = vmatprep.subr.mxu0 0.0
    %127 = vmatpush1.msra.mxu0 0.0
    %128 = vmatprep.subr.mxu0 0.0
    %129 = vmatpush1.msra.mxu0 0.0
    %130 = vmatprep.subr.mxu0 0.0
    %131 = vmatpush1.msra.mxu0 0.0
    %132 = vmatprep.subr.mxu0 0.0
    %133 = vmatpush1.msra.mxu0 0.0
    %134 = vmatprep.subr.mxu0 0.0
    %135 = vmatpush1.msra.mxu0 0.0
    %136 = vmatprep.subr.mxu0 0.0
    %137 = vmatpush1.msra.mxu0 0.0
    %138 = vmatprep.subr.mxu0 0.0
    %139 = vmatpush1.msra.mxu0 0.0
    %140 = vmatprep.subr.mxu0 0.0
    %141 = vmatpush1.msra.mxu0 0.0
    %142 = vmatprep.subr.mxu0 0.0
    %143 = vmatpush1.msra.mxu0 0.0
    %144 = vmatprep.subr.mxu0 0.0
    %145 = vmatpush1.msra.mxu0 0.0
    %146 = vmatprep.mubr.f32.mxu0 0.0
    %147 = vmatmul.mubr.f32.gmra.mrb[0].mxu0 %v71
    %v148 = vpop.f32.mrb[0].mxu0
    %v149 = vadd.f32 0.0, %v148
    %v150 = vpop.f32.mrb[0].mxu0
    %151 = vmatprep.mubr.f32.mxu0 0.0
    %152 = vmatmul.mubr.f32.gmra.mrb[0].mxu0 %v74
    %v153 = vpop.f32.mrb[0].mxu0
    %v154 = vadd.f32 0.0, %v153
    %v155 = vpop.f32.mrb[0].mxu0
    %156 = vmatprep.mubr.f32.mxu0 0.0
    %157 = vmatmul.mubr.f32.gmra.mrb[0].mxu0 %v77
    %v158 = vpop.f32.mrb[0].mxu0
    %v159 = vadd.f32 0.0, %v158
    %v160 = vpop.f32.mrb[0].mxu0
    %161 = vmatprep.mubr.f32.mxu0 0.0
    %162 = vmatmul.mubr.f32.gmra.mrb[0].mxu0 %v80
    %v163 = vpop.f32.mrb[0].mxu0
    %v164 = vadd.f32 0.0, %v163
    %v165 = vpop.f32.mrb[0].mxu0
    %166 = vdwg.mxu0
    %v167 = vadd.f32 %v149, %v154
    %v168 = vadd.f32 %v167, %v159
    %v169 = vadd.f32 %v168, %v164
    %v170 = vrot.slane %v169, 4
    %v171 = vadd.f32 %v169, %v170
    %v172 = vrot.slane %v171, 2
    %v173 = vadd.f32 %v171, %v172
    %v174 = vrot.slane %v173, 1
    %v175 = vadd.f32 %v173, %v174
    %v176 = vmul.f32 %v149, %v149
    %v177 = vmul.f32 %v154, %v154
    %v178 = vmul.f32 %v159, %v159
    %v179 = vmul.f32 %v164, %v164
    %v180 = vadd.f32 %v176, %v177
    %v181 = vadd.f32 %v180, %v178
    %v182 = vadd.f32 %v181, %v179
    %v183 = vrot.slane %v182, 4
    %v184 = vadd.f32 %v182, %v183
    %v185 = vrot.slane %v184, 2
    %v186 = vadd.f32 %v184, %v185
    %v187 = vrot.slane %v186, 1
    %v188 = vadd.f32 %v186, %v187
    %v189 = vmul.f32 %v175, 0.03125
    %v190 = vmul.f32 %v188, 0.03125
    %v191 = vmul.f32 %v189, %v189
    %v192 = vsub.f32 %v190, %v191
    %v193 = vmax.f32 %v192, 0.0
    %v194 = vadd.f32 %v193, 1e-05
    %v195 = vrsqrt.pop %v194
    %v196 = vld [vmem:[%s2] sm:$0x1]
    %v197 = vmul.f32 %v196, %v195
    %v198 = vld [vmem:[%s2 + $0x1] sm:$0x1]
    %v199 = vmul.f32 %v189, %v197
    %v200 = vsub.f32 %v198, %v199
    %v201 = vlaneseq
    %v202 = vshrl.u32 %v201, 7
    %v203 = vsub.s32 0, %v202
    %v204 = vrot.slane %v197, %v203
    %v205 = vmul.f32 %v149, %v204
    %v206 = vmul.f32 %v154, %v204
    %v207 = vmul.f32 %v159, %v204
    %v208 = vmul.f32 %v164, %v204
    %v209 = vlaneseq
    %v210 = vshrl.u32 %v209, 7
    %v211 = vsub.s32 0, %v210
    %v212 = vrot.slane %v200, %v211
    %v213 = vadd.f32 %v205, %v212
    %v214 = vadd.f32 %v206, %v212
    %v215 = vadd.f32 %v207, %v212
    %v216 = vadd.f32 %v208, %v212
    %v217 = vmax.f32 %v213, 0.0
    %v218 = vmax.f32 %v214, 0.0
    %v219 = vmax.f32 %v215, 0.0
    %v220 = vmax.f32 %v216, 0.0
    %v221 = vld [vmem:[#allocation6] sm:$0xff]
    %v222 = vld [vmem:[#allocation6 + $0x8] sm:$0xff]
    %v223 = vld [vmem:[#allocation6 + $0x10] sm:$0xff]
    %v224 = vld [vmem:[#allocation6 + $0x18] sm:$0xff]
    %v225 = vld [vmem:[#allocation6 + $0x20] sm:$0xff]
    %v226 = vld [vmem:[#allocation6 + $0x28] sm:$0xff]
    %v227 = vld [vmem:[#allocation6 + $0x30] sm:$0xff]
    %v228 = vld [vmem:[#allocation6 + $0x38] sm:$0xff]
    %v229 = vld [vmem:[#allocation6 + $0x40] sm:$0xff]
    %v230 = vld [vmem:[#allocation6 + $0x48] sm:$0xff]
    %v231 = vld [vmem:[#allocation6 + $0x50] sm:$0xff]
    %v232 = vld [vmem:[#allocation6 + $0x58] sm:$0xff]
    %v233 = vld [vmem:[#allocation6 + $0x60] sm:$0xff]
    %v234 = vld [vmem:[#allocation6 + $0x68] sm:$0xff]
    %v235 = vld [vmem:[#allocation6 + $0x70] sm:$0xff]
    %v236 = vld [vmem:[#allocation6 + $0x78] sm:$0xff]
    %v237 = vld [vmem:[%s4] sm:$0x1]
    %v239 = vlaneseq
    %v240 = vshrl.u32 %v239, 7
    %v241 = vsub.s32 0, %v240
    %v242 = vrot.slane %v237, %v241
    %244 = vmatprep.subr.mxu0 0.0
    %245 = vmatpush1.msra.mxu0 %v221
    %246 = vmatprep.subr.mxu0 0.0
    %247 = vmatpush1.msra.mxu0 %v222
    %248 = vmatprep.subr.mxu0 0.0
    %249 = vmatpush1.msra.mxu0 %v223
    %250 = vmatprep.subr.mxu0 0.0
    %251 = vmatpush1.msra.mxu0 %v224
    %252 = vmatprep.subr.mxu0 0.0
    %253 = vmatpush1.msra.mxu0 %v225
    %254 = vmatprep.subr.mxu0 0.0
    %255 = vmatpush1.msra.mxu0 %v226
    %256 = vmatprep.subr.mxu0 0.0
    %257 = vmatpush1.msra.mxu0 %v227
    %258 = vmatprep.subr.mxu0 0.0
    %259 = vmatpush1.msra.mxu0 %v228
    %260 = vmatprep.subr.mxu0 0.0
    %261 = vmatpush1.msra.mxu0 %v229
    %262 = vmatprep.subr.mxu0 0.0
    %263 = vmatpush1.msra.mxu0 %v230
    %264 = vmatprep.subr.mxu0 0.0
    %265 = vmatpush1.msra.mxu0 %v231
    %266 = vmatprep.subr.mxu0 0.0
    %267 = vmatpush1.msra.mxu0 %v232
    %268 = vmatprep.subr.mxu0 0.0
    %269 = vmatpush1.msra.mxu0 %v233
    %270 = vmatprep.subr.mxu0 0.0
    %271 = vmatpush1.msra.mxu0 %v234
    %272 = vmatprep.subr.mxu0 0.0
    %273 = vmatpush1.msra.mxu0 %v235
    %274 = vmatprep.subr.mxu0 0.0
    %275 = vmatpush1.msra.mxu0 %v236
    %276 = vmatprep.subr.mxu0 0.0
    %277 = vmatpush1.msra.mxu0 0.0
    %278 = vmatprep.subr.mxu0 0.0
    %279 = vmatpush1.msra.mxu0 0.0
    %280 = vmatprep.subr.mxu0 0.0
    %281 = vmatpush1.msra.mxu0 0.0
    %282 = vmatprep.subr.mxu0 0.0
    %283 = vmatpush1.msra.mxu0 0.0
    %284 = vmatprep.subr.mxu0 0.0
    %285 = vmatpush1.msra.mxu0 0.0
    %286 = vmatprep.subr.mxu0 0.0
    %287 = vmatpush1.msra.mxu0 0.0
    %288 = vmatprep.subr.mxu0 0.0
    %289 = vmatpush1.msra.mxu0 0.0
    %290 = vmatprep.subr.mxu0 0.0
    %291 = vmatpush1.msra.mxu0 0.0
    %292 = vmatprep.subr.mxu0 0.0
    %293 = vmatpush1.msra.mxu0 0.0
    %294 = vmatprep.subr.mxu0 0.0
    %295 = vmatpush1.msra.mxu0 0.0
    %296 = vmatprep.subr.mxu0 0.0
    %297 = vmatpush1.msra.mxu0 0.0
    %298 = vmatprep.subr.mxu0 0.0
    %299 = vmatpush1.msra.mxu0 0.0
    %300 = vmatprep.subr.mxu0 0.0
    %301 = vmatpush1.msra.mxu0 0.0
    %302 = vmatprep.subr.mxu0 0.0
    %303 = vmatpush1.msra.mxu0 0.0
    %304 = vmatprep.subr.mxu0 0.0
    %305 = vmatpush1.msra.mxu0 0.0
    %306 = vmatprep.subr.mxu0 0.0
    %307 = vmatpush1.msra.mxu0 0.0
    %308 = vmatprep.mubr.f32.mxu0 0.0
    %309 = vmatmul.mubr.f32.gmra.mrb[0].mxu0 %v217
    %v310 = vpop.f32.mrb[0].mxu0
    %v311 = vadd.f32 %v242, %v310
    %v312 = vpop.f32.mrb[0].mxu0
    %313 = vmatprep.mubr.f32.mxu0 0.0
    %314 = vmatmul.mubr.f32.gmra.mrb[0].mxu0 %v218
    %v315 = vpop.f32.mrb[0].mxu0
    %v316 = vadd.f32 %v242, %v315
    %v317 = vpop.f32.mrb[0].mxu0
    %318 = vmatprep.mubr.f32.mxu0 0.0
    %319 = vmatmul.mubr.f32.gmra.mrb[0].mxu0 %v219
    %v320 = vpop.f32.mrb[0].mxu0
    %v321 = vadd.f32 %v242, %v320
    %v322 = vpop.f32.mrb[0].mxu0
    %323 = vmatprep.mubr.f32.mxu0 0.0
    %324 = vmatmul.mubr.f32.gmra.mrb[0].mxu0 %v220
    %v325 = vpop.f32.mrb[0].mxu0
    %v326 = vadd.f32 %v242, %v325
    %v327 = vpop.f32.mrb[0].mxu0
    %328 = vdwg.mxu0
    %329 = vst [vmem:[%s5] sm:$0xff] %v311
    %330 = vst [vmem:[%s5 + $0x8] sm:$0xff] %v316
    %331 = vst [vmem:[%s5 + $0x10] sm:$0xff] %v321
    %332 = vst [vmem:[%s5 + $0x18] sm:$0xff] %v326
    // Predicated region
    $region34: #{a_call__.1} parent=1 // pred_check
      _
    $region35: #{a_call__.1} parent=1 // pred_check_branch
      %334 = sbr.rel (0) target = $region37
    $region36: #{a_call__.1} parent=1 // pred_region
      _
    $region37: #{a_call__.1} parent=1 // pred_fallthru
      _
    // Predicated region
    $region38: #{a_call__.1} parent=1 // pred_check
      _
    $region39: #{a_call__.1} parent=1 // pred_check_branch
      %336 = sbr.rel (0) target = $region41
    $region40: #{a_call__.1} parent=1 // pred_region
      _
    $region41: #{a_call__.1} parent=1 // pred_fallthru
      _
    %337 = vsyncpa [#allocation3], 1
    %338 = vsyncpa [#allocation5], 1

</llo_original>
